<compile_context>
chip_gen: v5e
topology: v5e:2x2
jax: 0.10.0
libtpu: 0.0.40
codegen_flags: <defaults>
</compile_context>

<pallas_src>
import functools

import jax
import jax.numpy as jnp
from jax.experimental import pallas as pl
from jax.experimental.pallas import tpu as pltpu


def _recurrent_gcn_kernel(xh_ref, c_ref, w_ref, bg_ref, pc_ref, wl_ref, bl_ref,
                          out_ref):
    """One tile of nodes (nodes on lanes): fused GCLSTM cell + ReLU + Linear head."""
    hdim = c_ref.shape[0]

    # Single fused MXU contraction for all four gate pre-activations:
    #   [4H, F_in+H] @ [F_in+H, TN] -> [4H, TN]
    gates = (jnp.dot(w_ref[...], xh_ref[...], preferred_element_type=jnp.float32)
             + bg_ref[...])

    c_old = c_ref[...]                       # [H, TN]
    pc = pc_ref[...]                         # [3H, 1] peephole weights (lane-bcast)

    i_g = jax.nn.sigmoid(gates[0 * hdim:1 * hdim] + pc[0 * hdim:1 * hdim] * c_old)
    f_g = jax.nn.sigmoid(gates[1 * hdim:2 * hdim] + pc[1 * hdim:2 * hdim] * c_old)
    t_g = jnp.tanh(gates[2 * hdim:3 * hdim])

    c_new = f_g * c_old + i_g * t_g          # [H, TN]
    o_g = jax.nn.sigmoid(gates[3 * hdim:4 * hdim] + pc[2 * hdim:3 * hdim] * c_new)
    h_new = o_g * jnp.tanh(c_new)            # [H, TN]

    # Linear head on relu(h_new): [H, H] @ [H, TN] + b.
    lin = (jnp.dot(wl_ref[...], jnp.maximum(h_new, 0.0),
                   preferred_element_type=jnp.float32)
           + bl_ref[...])

    # Packed lane-dense output slab: rows [0:H)=out, [H:2H)=h_0, [2H:3H)=c_0.
    out_ref[0 * hdim:1 * hdim, :] = lin
    out_ref[1 * hdim:2 * hdim, :] = h_new
    out_ref[2 * hdim:3 * hdim, :] = c_new


def _round_up(x, m):
    return ((x + m - 1) // m) * m


def _pick_tile_n(n_pad):
    """Largest convenient lane tile with >=2 grid steps (dual-TC sharding)."""
    if n_pad <= 128:
        return n_pad
    for t in (512, 384, 256, 128):
        if n_pad % t == 0 and n_pad // t >= 2:
            return t
    return 128


def recurrent_gcn_forward(x, edge_index, edge_weight, h, c, params, *, tile_n=None):
    """Wrapper: layout plumbing + pallas_call.  edge_index/edge_weight unused for K=1."""
    del edge_index, edge_weight  # ChebConv(K=1) ignores the graph structure.

    n_nodes, f_in = x.shape
    hdim = h.shape[-1]

    # ---- prepare fused / transposed weights (XLA side, tiny) -----------------
    w_t = jnp.concatenate([params["wx"], params["wh"]], axis=0).T   # [4H, F_in+H]
    bg_t = params["bg"].T                                           # [4H, 1]
    pc_t = params["pc"].reshape(3 * hdim)[:, None]                  # [3H, 1]
    wl_t = params["wl"].T                                           # [H, H]
    bl_t = params["bl"].T                                           # [H, 1]

    # ---- transpose node tensors so nodes land on lanes; pad node axis --------
    n_pad = _round_up(n_nodes, 256) if n_nodes > 128 else _round_up(n_nodes, 128)
    pad = n_pad - n_nodes
    xh_t = jnp.pad(jnp.concatenate([x, h], axis=1).T, ((0, 0), (0, pad)))  # [F_in+H, Np]
    c_t = jnp.pad(c.T, ((0, 0), (0, pad)))                                 # [H, Np]

    # ---- pick the node tile ---------------------------------------------------
    if tile_n is None:
        tile_n = _pick_tile_n(n_pad)
    assert n_pad % tile_n == 0 and (tile_n % 128 == 0 or tile_n == n_pad)

    grid = (n_pad // tile_n,)

    node_spec = lambda rows: pl.BlockSpec((rows, tile_n), lambda i: (0, i))
    full_spec = lambda shape: pl.BlockSpec(shape, lambda i: (0, 0))

    packed = pl.pallas_call(
        _recurrent_gcn_kernel,
        out_shape=jax.ShapeDtypeStruct((3 * hdim, n_pad), jnp.float32),
        grid_spec=pltpu.PrefetchScalarGridSpec(
            num_scalar_prefetch=0,
            grid=grid,
            in_specs=[
                node_spec(f_in + hdim),       # [X;H]^T
                node_spec(hdim),              # C^T
                full_spec(w_t.shape),         # W^T        [4H, F_in+H]
                full_spec(bg_t.shape),        # gate bias  [4H, 1]
                full_spec(pc_t.shape),        # peepholes  [3H, 1]
                full_spec(wl_t.shape),        # W_lin^T    [H, H]
                full_spec(bl_t.shape),        # b_lin      [H, 1]
            ],
            out_specs=node_spec(3 * hdim),    # packed [out; h_0; c_0]
        ),
        compiler_params=pltpu.CompilerParams(
            dimension_semantics=("parallel",)),
    )(xh_t, c_t, w_t, bg_t, pc_t, wl_t, bl_t)

    out = packed[0 * hdim:1 * hdim, :n_nodes].T
    h_0 = packed[1 * hdim:2 * hdim, :n_nodes].T
    c_0 = packed[2 * hdim:3 * hdim, :n_nodes].T
    return out, h_0, c_0


def make_params(key, node_feat_dim, hidden_dim):
    """Deterministic synthetic weights (glorot-ish scale), matching GCLSTM shapes."""
    ks = jax.random.split(key, 13)
    sx = 1.0 / jnp.sqrt(node_feat_dim)
    sh = 1.0 / jnp.sqrt(hidden_dim)

    # Per-gate X weights [F_in, H], ChebConv(K=1) weights [H, H], gate biases,
    # ChebConv biases, and peephole vectors (GCLSTM: w_c_i, w_c_f, w_c_o).
    w_x = [jax.random.normal(ks[i], (node_feat_dim, hidden_dim), jnp.float32) * sx
           for i in range(4)]
    w_h = [jax.random.normal(ks[4 + i], (hidden_dim, hidden_dim), jnp.float32) * sh
           for i in range(4)]
    b_gate = jax.random.normal(ks[8], (4, hidden_dim), jnp.float32) * 0.1
    b_cheb = jax.random.normal(ks[9], (4, hidden_dim), jnp.float32) * 0.1
    pc = jax.random.normal(ks[10], (3, hidden_dim), jnp.float32) * 0.1   # [w_ci; w_cf; w_co]

    wx = jnp.concatenate(w_x, axis=1)                       # [F_in, 4H]
    wh = jnp.concatenate(w_h, axis=1)                       # [H,    4H]
    bg = (b_gate + b_cheb).reshape(1, 4 * hidden_dim)       # [1,    4H]

    wl = jax.random.normal(ks[11], (hidden_dim, hidden_dim), jnp.float32) * sh
    bl = jax.random.normal(ks[12], (1, hidden_dim), jnp.float32) * 0.1
    return {"wx": wx, "wh": wh, "bg": bg, "pc": pc, "wl": wl, "bl": bl}


def reference_forward(x, h, c, params):
    """Plain-JAX reference of the same math (GCLSTM K=1 incl. peepholes)."""
    hdim = h.shape[-1]
    gates = x @ params["wx"] + h @ params["wh"] + params["bg"]
    w_ci, w_cf, w_co = params["pc"][0], params["pc"][1], params["pc"][2]
    i_g = jax.nn.sigmoid(gates[:, 0 * hdim:1 * hdim] + w_ci * c)
    f_g = jax.nn.sigmoid(gates[:, 1 * hdim:2 * hdim] + w_cf * c)
    t_g = jnp.tanh(gates[:, 2 * hdim:3 * hdim])
    c_new = f_g * c + i_g * t_g
    o_g = jax.nn.sigmoid(gates[:, 3 * hdim:4 * hdim] + w_co * c_new)
    h_new = o_g * jnp.tanh(c_new)
    out = jnp.maximum(h_new, 0.0) @ params["wl"] + params["bl"]
    return out, h_new, c_new


if __name__ == "__main__":
    NUM_NODES = 256
    NODE_FEAT_DIM = 16
    HIDDEN_DIM = 32
    NUM_EDGES = 512

    key = jax.random.PRNGKey(0)
    k_x, k_h, k_c, k_ei, k_ew, k_p = jax.random.split(key, 6)

    x = jax.random.normal(k_x, (NUM_NODES, NODE_FEAT_DIM), jnp.float32)
    h = jax.random.normal(k_h, (NUM_NODES, HIDDEN_DIM), jnp.float32)
    c = jax.random.normal(k_c, (NUM_NODES, HIDDEN_DIM), jnp.float32)
    edge_index = jax.random.randint(k_ei, (2, NUM_EDGES), 0, NUM_NODES, jnp.int32)
    edge_weight = jax.random.uniform(k_ew, (NUM_EDGES,), jnp.float32)

    params = make_params(k_p, NODE_FEAT_DIM, HIDDEN_DIM)

    fwd = jax.jit(functools.partial(recurrent_gcn_forward, params=params))
    out, h_0, c_0 = fwd(x, edge_index, edge_weight, h, c)
    jax.block_until_ready((out, h_0, c_0))

    ref_out, ref_h0, ref_c0 = reference_forward(x, h, c, params)
    assert jnp.allclose(out, ref_out, atol=1e-4, rtol=1e-4)
    assert jnp.allclose(h_0, ref_h0, atol=1e-4, rtol=1e-4)
    assert jnp.allclose(c_0, ref_c0, atol=1e-4, rtol=1e-4)

    print("KERNEL_OK")
</pallas_src>

<mosaic_0001>
module attributes {stable_mosaic.version = 11 : i64} {
  func.func @_recurrent_gcn_kernel(%arg0: i32, %arg1: memref<48x128xf32, #tpu.memory_space<vmem>>, %arg2: memref<32x128xf32, #tpu.memory_space<vmem>>, %arg3: memref<128x48xf32, #tpu.memory_space<vmem>>, %arg4: memref<128x1xf32, #tpu.memory_space<vmem>>, %arg5: memref<96x1xf32, #tpu.memory_space<vmem>>, %arg6: memref<32x32xf32, #tpu.memory_space<vmem>>, %arg7: memref<32x1xf32, #tpu.memory_space<vmem>>, %arg8: memref<96x128xf32, #tpu.memory_space<vmem>>) attributes {dimension_semantics = [#tpu.dimension_semantics<parallel>], iteration_bounds = array<i64: 2>, scalar_prefetch = 0 : i64, scratch_operands = 0 : i64, tpu.core_type = #tpu.core_type<tc>, window_params = [{transform_indices = @transform_0, window_bounds = array<i64: 48, 128>}, {transform_indices = @transform_1, window_bounds = array<i64: 32, 128>}, {pipeline_mode = #tpu.pipeline_mode<synchronous>, transform_indices = @transform_2, window_bounds = array<i64: 128, 48>}, {pipeline_mode = #tpu.pipeline_mode<synchronous>, transform_indices = @transform_3, window_bounds = array<i64: 128, 1>}, {pipeline_mode = #tpu.pipeline_mode<synchronous>, transform_indices = @transform_4, window_bounds = array<i64: 96, 1>}, {pipeline_mode = #tpu.pipeline_mode<synchronous>, transform_indices = @transform_5, window_bounds = array<i64: 32, 32>}, {pipeline_mode = #tpu.pipeline_mode<synchronous>, transform_indices = @transform_6, window_bounds = array<i64: 32, 1>}, {transform_indices = @transform_7, window_bounds = array<i64: 96, 128>}]} {
    %c0 = arith.constant 0 : index
    %c0_0 = arith.constant 0 : index
    %0 = vector.load %arg3[%c0, %c0_0] : memref<128x48xf32, #tpu.memory_space<vmem>>, vector<128x48xf32>
    %c0_1 = arith.constant 0 : index
    %c0_2 = arith.constant 0 : index
    %1 = vector.load %arg1[%c0_1, %c0_2] : memref<48x128xf32, #tpu.memory_space<vmem>>, vector<48x128xf32>
    %cst = arith.constant dense<0.000000e+00> : vector<128x128xf32>
    %2 = tpu.matmul %0, %1, %cst {dimension_numbers = #tpu.dot_dimension_numbers<[1], [0], [0], [1], [0, 0, 1, 1], [], []>} : vector<128x48xf32>, vector<48x128xf32>, vector<128x128xf32> -> vector<128x128xf32>
    %c0_3 = arith.constant 0 : index
    %c0_4 = arith.constant 0 : index
    %3 = vector.load %arg4[%c0_3, %c0_4] : memref<128x1xf32, #tpu.memory_space<vmem>>, vector<128x1xf32>
    %4 = vector.broadcast %3 : vector<128x1xf32> to vector<128x128xf32>
    %5 = arith.addf %2, %4 : vector<128x128xf32>
    %c0_5 = arith.constant 0 : index
    %c0_6 = arith.constant 0 : index
    %6 = vector.load %arg2[%c0_5, %c0_6] : memref<32x128xf32, #tpu.memory_space<vmem>>, vector<32x128xf32>
    %c0_7 = arith.constant 0 : index
    %c0_8 = arith.constant 0 : index
    %7 = vector.load %arg5[%c0_7, %c0_8] : memref<96x1xf32, #tpu.memory_space<vmem>>, vector<96x1xf32>
    %8 = vector.extract_strided_slice %5 {offsets = [0, 0], sizes = [32, 128], strides = [1, 1]} : vector<128x128xf32> to vector<32x128xf32>
    %9 = vector.extract_strided_slice %7 {offsets = [0, 0], sizes = [32, 1], strides = [1, 1]} : vector<96x1xf32> to vector<32x1xf32>
    %10 = vector.broadcast %9 : vector<32x1xf32> to vector<32x128xf32>
    %11 = arith.mulf %10, %6 : vector<32x128xf32>
    %12 = arith.addf %8, %11 : vector<32x128xf32>
    %13 = arith.negf %12 : vector<32x128xf32>
    %14 = math.exp %13 : vector<32x128xf32>
    %cst_9 = arith.constant 1.000000e+00 : f32
    %15 = vector.broadcast %cst_9 : f32 to vector<32x128xf32>
    %16 = arith.addf %15, %14 : vector<32x128xf32>
    %17 = arith.divf %15, %16 : vector<32x128xf32>
    %18 = vector.extract_strided_slice %5 {offsets = [32, 0], sizes = [32, 128], strides = [1, 1]} : vector<128x128xf32> to vector<32x128xf32>
    %19 = vector.extract_strided_slice %7 {offsets = [32, 0], sizes = [32, 1], strides = [1, 1]} : vector<96x1xf32> to vector<32x1xf32>
    %20 = vector.broadcast %19 : vector<32x1xf32> to vector<32x128xf32>
    %21 = arith.mulf %20, %6 : vector<32x128xf32>
    %22 = arith.addf %18, %21 : vector<32x128xf32>
    %23 = arith.negf %22 : vector<32x128xf32>
    %24 = math.exp %23 : vector<32x128xf32>
    %cst_10 = arith.constant 1.000000e+00 : f32
    %25 = vector.broadcast %cst_10 : f32 to vector<32x128xf32>
    %26 = arith.addf %25, %24 : vector<32x128xf32>
    %27 = arith.divf %25, %26 : vector<32x128xf32>
    %28 = vector.extract_strided_slice %5 {offsets = [64, 0], sizes = [32, 128], strides = [1, 1]} : vector<128x128xf32> to vector<32x128xf32>
    %29 = math.tanh %28 : vector<32x128xf32>
    %30 = arith.mulf %27, %6 : vector<32x128xf32>
    %31 = arith.mulf %17, %29 : vector<32x128xf32>
    %32 = arith.addf %30, %31 : vector<32x128xf32>
    %33 = vector.extract_strided_slice %5 {offsets = [96, 0], sizes = [32, 128], strides = [1, 1]} : vector<128x128xf32> to vector<32x128xf32>
    %34 = vector.extract_strided_slice %7 {offsets = [64, 0], sizes = [32, 1], strides = [1, 1]} : vector<96x1xf32> to vector<32x1xf32>
    %35 = vector.broadcast %34 : vector<32x1xf32> to vector<32x128xf32>
    %36 = arith.mulf %35, %32 : vector<32x128xf32>
    %37 = arith.addf %33, %36 : vector<32x128xf32>
    %38 = arith.negf %37 : vector<32x128xf32>
    %39 = math.exp %38 : vector<32x128xf32>
    %cst_11 = arith.constant 1.000000e+00 : f32
    %40 = vector.broadcast %cst_11 : f32 to vector<32x128xf32>
    %41 = arith.addf %40, %39 : vector<32x128xf32>
    %42 = arith.divf %40, %41 : vector<32x128xf32>
    %43 = math.tanh %32 : vector<32x128xf32>
    %44 = arith.mulf %42, %43 : vector<32x128xf32>
    %c0_12 = arith.constant 0 : index
    %c0_13 = arith.constant 0 : index
    %45 = vector.load %arg6[%c0_12, %c0_13] : memref<32x32xf32, #tpu.memory_space<vmem>>, vector<32x32xf32>
    %cst_14 = arith.constant 0.000000e+00 : f32
    %46 = vector.broadcast %cst_14 : f32 to vector<32x128xf32>
    %47 = arith.maximumf %44, %46 : vector<32x128xf32>
    %cst_15 = arith.constant dense<0.000000e+00> : vector<32x128xf32>
    %48 = tpu.matmul %45, %47, %cst_15 {dimension_numbers = #tpu.dot_dimension_numbers<[1], [0], [0], [1], [0, 0, 1, 1], [], []>} : vector<32x32xf32>, vector<32x128xf32>, vector<32x128xf32> -> vector<32x128xf32>
    %c0_16 = arith.constant 0 : index
    %c0_17 = arith.constant 0 : index
    %49 = vector.load %arg7[%c0_16, %c0_17] : memref<32x1xf32, #tpu.memory_space<vmem>>, vector<32x1xf32>
    %50 = vector.broadcast %49 : vector<32x1xf32> to vector<32x128xf32>
    %51 = arith.addf %48, %50 : vector<32x128xf32>
    %c0_18 = arith.constant 0 : index
    %c0_19 = arith.constant 0 : index
    %52 = vector.load %arg8[%c0_18, %c0_19] : memref<96x128xf32, #tpu.memory_space<vmem>>, vector<32x128xf32>
    tpu.vector_store %arg8[%c0_18, %c0_19], %51 {strides = array<i32>} : memref<96x128xf32, #tpu.memory_space<vmem>>, vector<32x128xf32>,
    %c32 = arith.constant 32 : index
    %c0_20 = arith.constant 0 : index
    %53 = vector.load %arg8[%c32, %c0_20] : memref<96x128xf32, #tpu.memory_space<vmem>>, vector<32x128xf32>
    tpu.vector_store %arg8[%c32, %c0_20], %44 {strides = array<i32>} : memref<96x128xf32, #tpu.memory_space<vmem>>, vector<32x128xf32>,
    %c64 = arith.constant 64 : index
    %c0_21 = arith.constant 0 : index
    %54 = vector.load %arg8[%c64, %c0_21] : memref<96x128xf32, #tpu.memory_space<vmem>>, vector<32x128xf32>
    tpu.vector_store %arg8[%c64, %c0_21], %32 {strides = array<i32>} : memref<96x128xf32, #tpu.memory_space<vmem>>, vector<32x128xf32>,
    return
  }
  func.func @transform_0(%arg0: i32) -> (i32, i32) {
    %c0_i32 = arith.constant 0 : i32
    %c0_i32_0 = arith.constant 0 : i32
    return %c0_i32, %arg0 : i32, i32
  }
  func.func @transform_1(%arg0: i32) -> (i32, i32) {
    %c0_i32 = arith.constant 0 : i32
    %c0_i32_0 = arith.constant 0 : i32
    return %c0_i32, %arg0 : i32, i32
  }
  func.func @transform_2(%arg0: i32) -> (i32, i32) {
    %c0_i32 = arith.constant 0 : i32
    %c0_i32_0 = arith.constant 0 : i32
    %c0_i32_1 = arith.constant 0 : i32
    return %c0_i32, %c0_i32_0 : i32, i32
  }
  func.func @transform_3(%arg0: i32) -> (i32, i32) {
    %c0_i32 = arith.constant 0 : i32
    %c0_i32_0 = arith.constant 0 : i32
    %c0_i32_1 = arith.constant 0 : i32
    return %c0_i32, %c0_i32_0 : i32, i32
  }
  func.func @transform_4(%arg0: i32) -> (i32, i32) {
    %c0_i32 = arith.constant 0 : i32
    %c0_i32_0 = arith.constant 0 : i32
    %c0_i32_1 = arith.constant 0 : i32
    return %c0_i32, %c0_i32_0 : i32, i32
  }
  func.func @transform_5(%arg0: i32) -> (i32, i32) {
    %c0_i32 = arith.constant 0 : i32
    %c0_i32_0 = arith.constant 0 : i32
    %c0_i32_1 = arith.constant 0 : i32
    return %c0_i32, %c0_i32_0 : i32, i32
  }
  func.func @transform_6(%arg0: i32) -> (i32, i32) {
    %c0_i32 = arith.constant 0 : i32
    %c0_i32_0 = arith.constant 0 : i32
    %c0_i32_1 = arith.constant 0 : i32
    return %c0_i32, %c0_i32_0 : i32, i32
  }
  func.func @transform_7(%arg0: i32) -> (i32, i32) {
    %c0_i32 = arith.constant 0 : i32
    %c0_i32_0 = arith.constant 0 : i32
    return %c0_i32, %arg0 : i32, i32
  }
}

</mosaic_0001>

<llo_original>
// kernel: recurrent_gcn_forward.1
$region0: #{recurrent_gcn_forward.1}
  #allocation0 [shape = 'u32[]', space=smem, size = 0x4, offset = 0x4, fixed_abs, tag = 'smem constant byte address 0x4 - core index']
  #allocation1 [shape = 'u32[72,128]{1,0:T(1,128)}', space=vmem, size = 0x9000, scoped, tag = 'internal scratch']
  %s0 = inlined_call_operand.vmem [shape: f32[48,256], index: 0, kind: input, shape index: {}]
  %s1 = inlined_call_operand.vmem [shape: f32[32,256], index: 1, kind: input, shape index: {}]
  %s2 = inlined_call_operand.hbm [shape: f32[128,48], index: 2, kind: input, shape index: {}]
  %s3 = inlined_call_operand.vmem [shape: f32[128,1], index: 3, kind: input, shape index: {}]
  %s4 = inlined_call_operand.hbm [shape: f32[96,1], index: 4, kind: input, shape index: {}]
  %s5 = inlined_call_operand.hbm [shape: f32[32,32], index: 5, kind: input, shape index: {}]
  %s6 = inlined_call_operand.hbm [shape: f32[32,1], index: 6, kind: input, shape index: {}]
  %s7 = inlined_call_operand.vmem [shape: f32[96,256], index: 7, kind: output, shape index: {}]
  %s8 = sld [smem:[#allocation0]]
  $region187: #{recurrent_gcn_forward.1} parent=0
    _
  %s10 = ssub.s32 1, %s8
  %s11 = scalar_select 0, %s10, %s8
  $region1: #{recurrent_gcn_forward.1} parent=0
    #allocation2 [shape = 'u8[49152]{0}', space=vmem, size = 0xc000, scoped, tag = 'input window, operand 0']
    #allocation3 [shape = 'u8[32768]{0}', space=vmem, size = 0x8000, scoped, tag = 'input window, operand 1']
    #allocation4 [shape = 'u8[65536]{0}', space=vmem, size = 0x10000, scoped, tag = 'input window, operand 2, single buffered']
    #allocation5 [shape = 's32[2]{0}', space=sflag, size = 0x8, scoped, tag = 'scoped memory for recurrent_gcn_forward.1']
    #allocation6 [shape = 'u8[49152]{0}', space=vmem, size = 0xc000, scoped, tag = 'input window, operand 4, single buffered']
    #allocation7 [shape = 's32[1]{0}', space=sflag, size = 0x4, scoped, tag = 'scoped memory for recurrent_gcn_forward.1']
    #allocation8 [shape = 'u8[16384]{0}', space=vmem, size = 0x4000, scoped, tag = 'input window, operand 5, single buffered']
    #allocation9 [shape = 'u8[16384]{0}', space=vmem, size = 0x4000, scoped, tag = 'input window, operand 6, single buffered']
    #allocation10 [shape = 's32[1]{0}', space=sflag, size = 0x4, scoped, tag = 'scoped memory for recurrent_gcn_forward.1']
    #allocation11 [shape = 'u8[98304]{0}', space=vmem, size = 0x18000, scoped, tag = 'output window, operand 0']
    %12 = vsyncpa [#allocation5], 0
    %13 = vsyncpa [#allocation7], 0
    %14 = vsyncpa [#allocation10], 0
    loop: start=0, step=1, limit=4
    $region2: #{recurrent_gcn_forward.1} parent=1 // loop_pre_header
      _
    $region3: #{recurrent_gcn_forward.1} parent=1 // loop_header
      %s16 = sphi 0, %s20
      %p17 = scmp.ge.s32.totalorder %s16, 4
      %s26 = sphi 0, %s28
      %s29 = sphi 0, %s26
      %s30 = sphi 0, %s29
      %s46 = sphi 0, %s30
      %s52 = sphi 0, %s54
      %s55 = sphi 0, %s52
      %s56 = sphi 0, %s55
      %s72 = sphi 0, %s56
      %s76 = sphi 0, %s76
      %s78 = sphi 0, %s76
      %s79 = sphi 0, %s78
      %s93 = sphi 0, %s79
      %s97 = sphi 0, %s97
      %s99 = sphi 0, %s97
      %s100 = sphi 0, %s99
      %s114 = sphi 0, %s100
      %s118 = sphi 0, %s118
      %s120 = sphi 0, %s118
      %s121 = sphi 0, %s120
      %s135 = sphi 0, %s121
      %s139 = sphi 0, %s139
      %s141 = sphi 0, %s139
      %s142 = sphi 0, %s141
      %s156 = sphi 0, %s142
      %s160 = sphi 0, %s160
      %s162 = sphi 0, %s160
      %s163 = sphi 0, %s162
      %s177 = sphi 0, %s163
      %s183 = sphi 0, %s185
      %s186 = sphi 0, %s183
      %s187 = sphi 0, %s186
      %s203 = sphi 0, %s187
    $region4: #{recurrent_gcn_forward.1} parent=1 // loop_header_branch
      %19 = sbr.rel (%p17) target = $region8
    $region5: #{recurrent_gcn_forward.1} parent=1 // loop_body
      %s21 = ssub.s32 %s16, 1
      %s22 = ssub.s32 %s16, 2
      %s23 = sadd.s32 %s16, 1
      %s24 = ssub.s32 %s16, %s23
      %p25 = scmp.eq.s32.totalorder %s24, 0
      %s27 = sadd.s32 %s26, 1
      %s28 = scalar_select %p25, %s26, %s27
      %p31 = pneg %p25
      %p32 = scmp.eq.s32.totalorder %s16, 1
      %p33 = por %p31, %p32
      %p34 = scmp.ne.s32.totalorder %s26, %s29
      %p35 = scmp.eq.s32.totalorder %s16, 0
      %p36 = por %p34, %p35
      %p37 = scmp.ne.s32.totalorder %s26, %s29
      %p38 = scmp.eq.s32.totalorder %s21, 1
      %p39 = por %p37, %p38
      %p40 = scmp.ne.s32.totalorder %s29, %s30
      %p41 = scmp.eq.s32.totalorder %s21, 0
      %p42 = por %p40, %p41
      %p43 = scmp.ne.s32.totalorder %s29, %s30
      %p44 = scmp.eq.s32.totalorder %s22, 1
      %p45 = por %p43, %p44
      %p47 = scmp.ne.s32.totalorder %s30, %s46
      %p48 = scmp.eq.s32.totalorder %s22, 0
      %p49 = por %p47, %p48
      %s50 = ssub.s32 %s16, %s23
      %p51 = scmp.eq.s32.totalorder %s50, 0
      %s53 = sadd.s32 %s52, 1
      %s54 = scalar_select %p51, %s52, %s53
      %p57 = pneg %p51
      %p58 = scmp.eq.s32.totalorder %s16, 1
      %p59 = por %p57, %p58
      %p60 = scmp.ne.s32.totalorder %s52, %s55
      %p61 = scmp.eq.s32.totalorder %s16, 0
      %p62 = por %p60, %p61
      %p63 = scmp.ne.s32.totalorder %s52, %s55
      %p64 = scmp.eq.s32.totalorder %s21, 1
      %p65 = por %p63, %p64
      %p66 = scmp.ne.s32.totalorder %s55, %s56
      %p67 = scmp.eq.s32.totalorder %s21, 0
      %p68 = por %p66, %p67
      %p69 = scmp.ne.s32.totalorder %s55, %s56
      %p70 = scmp.eq.s32.totalorder %s22, 1
      %p71 = por %p69, %p70
      %p73 = scmp.ne.s32.totalorder %s56, %s72
      %p74 = scmp.eq.s32.totalorder %s22, 0
      %p75 = por %p73, %p74
      %s77 = sadd.s32 %s76, 1
      %p80 = scmp.eq.s32.totalorder %s16, 1
      %p81 = scmp.ne.s32.totalorder %s76, %s78
      %p82 = scmp.eq.s32.totalorder %s16, 0
      %p83 = por %p81, %p82
      %p84 = scmp.ne.s32.totalorder %s76, %s78
      %p85 = scmp.eq.s32.totalorder %s21, 1
      %p86 = por %p84, %p85
      %p87 = scmp.ne.s32.totalorder %s78, %s79
      %p88 = scmp.eq.s32.totalorder %s21, 0
      %p89 = por %p87, %p88
      %p90 = scmp.ne.s32.totalorder %s78, %s79
      %p91 = scmp.eq.s32.totalorder %s22, 1
      %p92 = por %p90, %p91
      %p94 = scmp.ne.s32.totalorder %s79, %s93
      %p95 = scmp.eq.s32.totalorder %s22, 0
      %p96 = por %p94, %p95
      %s98 = sadd.s32 %s97, 1
      %p101 = scmp.eq.s32.totalorder %s16, 1
      %p102 = scmp.ne.s32.totalorder %s97, %s99
      %p103 = scmp.eq.s32.totalorder %s16, 0
      %p104 = por %p102, %p103
      %p105 = scmp.ne.s32.totalorder %s97, %s99
      %p106 = scmp.eq.s32.totalorder %s21, 1
      %p107 = por %p105, %p106
      %p108 = scmp.ne.s32.totalorder %s99, %s100
      %p109 = scmp.eq.s32.totalorder %s21, 0
      %p110 = por %p108, %p109
      %p111 = scmp.ne.s32.totalorder %s99, %s100
      %p112 = scmp.eq.s32.totalorder %s22, 1
      %p113 = por %p111, %p112
      %p115 = scmp.ne.s32.totalorder %s100, %s114
      %p116 = scmp.eq.s32.totalorder %s22, 0
      %p117 = por %p115, %p116
      %s119 = sadd.s32 %s118, 1
      %p122 = scmp.eq.s32.totalorder %s16, 1
      %p123 = scmp.ne.s32.totalorder %s118, %s120
      %p124 = scmp.eq.s32.totalorder %s16, 0
      %p125 = por %p123, %p124
      %p126 = scmp.ne.s32.totalorder %s118, %s120
      %p127 = scmp.eq.s32.totalorder %s21, 1
      %p128 = por %p126, %p127
      %p129 = scmp.ne.s32.totalorder %s120, %s121
      %p130 = scmp.eq.s32.totalorder %s21, 0
      %p131 = por %p129, %p130
      %p132 = scmp.ne.s32.totalorder %s120, %s121
      %p133 = scmp.eq.s32.totalorder %s22, 1
      %p134 = por %p132, %p133
      %p136 = scmp.ne.s32.totalorder %s121, %s135
      %p137 = scmp.eq.s32.totalorder %s22, 0
      %p138 = por %p136, %p137
      %s140 = sadd.s32 %s139, 1
      %p143 = scmp.eq.s32.totalorder %s16, 1
      %p144 = scmp.ne.s32.totalorder %s139, %s141
      %p145 = scmp.eq.s32.totalorder %s16, 0
      %p146 = por %p144, %p145
      %p147 = scmp.ne.s32.totalorder %s139, %s141
      %p148 = scmp.eq.s32.totalorder %s21, 1
      %p149 = por %p147, %p148
      %p150 = scmp.ne.s32.totalorder %s141, %s142
      %p151 = scmp.eq.s32.totalorder %s21, 0
      %p152 = por %p150, %p151
      %p153 = scmp.ne.s32.totalorder %s141, %s142
      %p154 = scmp.eq.s32.totalorder %s22, 1
      %p155 = por %p153, %p154
      %p157 = scmp.ne.s32.totalorder %s142, %s156
      %p158 = scmp.eq.s32.totalorder %s22, 0
      %p159 = por %p157, %p158
      %s161 = sadd.s32 %s160, 1
      %p164 = scmp.eq.s32.totalorder %s16, 1
      %p165 = scmp.ne.s32.totalorder %s160, %s162
      %p166 = scmp.eq.s32.totalorder %s16, 0
      %p167 = por %p165, %p166
      %p168 = scmp.ne.s32.totalorder %s160, %s162
      %p169 = scmp.eq.s32.totalorder %s21, 1
      %p170 = por %p168, %p169
      %p171 = scmp.ne.s32.totalorder %s162, %s163
      %p172 = scmp.eq.s32.totalorder %s21, 0
      %p173 = por %p171, %p172
      %p174 = scmp.ne.s32.totalorder %s162, %s163
      %p175 = scmp.eq.s32.totalorder %s22, 1
      %p176 = por %p174, %p175
      %p178 = scmp.ne.s32.totalorder %s163, %s177
      %p179 = scmp.eq.s32.totalorder %s22, 0
      %p180 = por %p178, %p179
      %s181 = ssub.s32 %s16, %s23
      %p182 = scmp.eq.s32.totalorder %s181, 0
      %s184 = sadd.s32 %s183, 1
      %s185 = scalar_select %p182, %s183, %s184
      %p188 = pneg %p182
      %p189 = scmp.eq.s32.totalorder %s16, 1
      %p190 = por %p188, %p189
      %p191 = scmp.ne.s32.totalorder %s183, %s186
      %p192 = scmp.eq.s32.totalorder %s16, 0
      %p193 = por %p191, %p192
      %p194 = scmp.ne.s32.totalorder %s183, %s186
      %p195 = scmp.eq.s32.totalorder %s21, 1
      %p196 = por %p194, %p195
      %p197 = scmp.ne.s32.totalorder %s186, %s187
      %p198 = scmp.eq.s32.totalorder %s21, 0
      %p199 = por %p197, %p198
      %p200 = scmp.ne.s32.totalorder %s186, %s187
      %p201 = scmp.eq.s32.totalorder %s22, 1
      %p202 = por %p200, %p201
      %p204 = scmp.ne.s32.totalorder %s187, %s203
      %p205 = scmp.eq.s32.totalorder %s22, 0
      %p206 = por %p204, %p205
      %p207 = scmp.le.s32.totalorder 1, %s16
      %p208 = scmp.lt.s32.totalorder %s16, 3
      %p209 = pnand %p207, %p208
      %p210 = pneg %p209
      // Predicated region
      $region9: #{recurrent_gcn_forward.1} parent=5 // pred_check
        _
      $region10: #{recurrent_gcn_forward.1} parent=5 // pred_check_branch
        %212 = sbr.rel (%p209) target = $region12
      $region11: #{recurrent_gcn_forward.1} parent=5 // pred_region
        %s213 = ssub.s32 %s16, 1
        // Predicated region
        $region13: #{recurrent_gcn_forward.1} parent=11 // pred_check
          %p214 = pneg %p89
        $region14: #{recurrent_gcn_forward.1} parent=11 // pred_check_branch
          %216 = sbr.rel (%p214) target = $region16
        $region15: #{recurrent_gcn_forward.1} parent=11 // pred_region
          %218 = vsyncadd [#allocation5], 0
          %s219 = sshll.u32 %s2, 4
          %s220 = int_to_ptr.hbm [resolvable:$true] %s219
          %s221 = sshll.u32 [#allocation4], 4
          %s222 = int_to_ptr.vmem [resolvable:$true] %s221
          %227 = dma.hbm_to_vmem [thread:$0]  %s220, 2048, %s222, [#allocation5], 128, 128, 8
        $region16: #{recurrent_gcn_forward.1} parent=11 // pred_fallthru
          _
        // Predicated region
        $region17: #{recurrent_gcn_forward.1} parent=11 // pred_check
          %p228 = pneg %p110
        $region18: #{recurrent_gcn_forward.1} parent=11 // pred_check_branch
          %230 = sbr.rel (%p228) target = $region20
        $region19: #{recurrent_gcn_forward.1} parent=11 // pred_region
          _
        $region20: #{recurrent_gcn_forward.1} parent=11 // pred_fallthru
          _
        // Predicated region
        $region21: #{recurrent_gcn_forward.1} parent=11 // pred_check
          %p231 = pneg %p131
        $region22: #{recurrent_gcn_forward.1} parent=11 // pred_check_branch
          %233 = sbr.rel (%p231) target = $region24
        $region23: #{recurrent_gcn_forward.1} parent=11 // pred_region
          %235 = vsyncadd [#allocation7], 0
          %s236 = sshll.u32 %s4, 4
          %s237 = int_to_ptr.hbm [resolvable:$true] %s236
          %s238 = sshll.u32 [#allocation6], 4
          %s239 = int_to_ptr.vmem [resolvable:$true] %s238
          %244 = dma.hbm_to_vmem [thread:$0]  %s237, 1536, %s239, [#allocation7], 128, 128, 8
        $region24: #{recurrent_gcn_forward.1} parent=11 // pred_fallthru
          _
        // Predicated region
        $region25: #{recurrent_gcn_forward.1} parent=11 // pred_check
          %p245 = pneg %p152
        $region26: #{recurrent_gcn_forward.1} parent=11 // pred_check_branch
          %247 = sbr.rel (%p245) target = $region28
        $region27: #{recurrent_gcn_forward.1} parent=11 // pred_region
          %249 = vsyncadd [#allocation7], 0
          %s250 = sshll.u32 %s5, 4
          %s251 = int_to_ptr.hbm [resolvable:$true] %s250
          %s252 = sshll.u32 [#allocation8], 4
          %s253 = int_to_ptr.vmem [resolvable:$true] %s252
          %258 = dma.hbm_to_vmem [thread:$0]  %s251, 512, %s253, [#allocation7], 128, 128, 8
        $region28: #{recurrent_gcn_forward.1} parent=11 // pred_fallthru
          _
        // Predicated region
        $region29: #{recurrent_gcn_forward.1} parent=11 // pred_check
          %p259 = pneg %p173
        $region30: #{recurrent_gcn_forward.1} parent=11 // pred_check_branch
          %261 = sbr.rel (%p259) target = $region32
        $region31: #{recurrent_gcn_forward.1} parent=11 // pred_region
          %263 = vsyncadd [#allocation10], 0
          %s264 = sshll.u32 %s6, 4
          %s265 = int_to_ptr.hbm [resolvable:$true] %s264
          %s266 = sshll.u32 [#allocation9], 4
          %s267 = int_to_ptr.vmem [resolvable:$true] %s266
          %272 = dma.hbm_to_vmem [thread:$0]  %s265, 512, %s267, [#allocation10], 128, 128, 8
        $region32: #{recurrent_gcn_forward.1} parent=11 // pred_fallthru
          _
      $region12: #{recurrent_gcn_forward.1} parent=5 // pred_fallthru
        _
      %p273 = scmp.lt.s32.totalorder %s16, 2
      // Predicated region
      $region33: #{recurrent_gcn_forward.1} parent=5 // pred_check
        %p274 = pneg %p273
      $region34: #{recurrent_gcn_forward.1} parent=5 // pred_check_branch
        %276 = sbr.rel (%p274) target = $region36
      $region35: #{recurrent_gcn_forward.1} parent=5 // pred_region
        // Predicated region
        $region37: #{recurrent_gcn_forward.1} parent=35 // pred_check
          %p277 = pneg %p36
        $region38: #{recurrent_gcn_forward.1} parent=35 // pred_check_branch
          %279 = sbr.rel (%p277) target = $region40
        $region39: #{recurrent_gcn_forward.1} parent=35 // pred_region
          %s280 = sand.u32 %s26, 1
          %s281 = sand.u32 %s26, 1
          %s282 = smul.addr %s281, 48
          %s283 = scalar_lea.vmem [#allocation2], %s282
          %s284 = smul.addr %s16, 8
          %s285 = scalar_lea.vmem %s0, %s284
          // Predicated region
          $region41: #{recurrent_gcn_forward.1} parent=39 // pred_check
            _
          $region42: #{recurrent_gcn_forward.1} parent=39 // pred_check_branch
            %287 = sbr.rel (0) target = $region44
          $region43: #{recurrent_gcn_forward.1} parent=39 // pred_region
            // Predicated region
            $region45: #{recurrent_gcn_forward.1} parent=43 // pred_check
              _
            $region46: #{recurrent_gcn_forward.1} parent=43 // pred_check_branch
              %289 = sbr.rel (0) target = $region48
            $region47: #{recurrent_gcn_forward.1} parent=43 // pred_region
              // Predicated region
              $region60: #{recurrent_gcn_forward.1} parent=47 // pred_check
                _
              $region61: #{recurrent_gcn_forward.1} parent=47 // pred_check_branch
                %315 = sbr.rel (0) target = $region63
              $region62: #{recurrent_gcn_forward.1} parent=47 // pred_region
                loop: start=0, step=1, limit=1
                $region64: #{recurrent_gcn_forward.1} parent=62 // loop_pre_header
                  _
                $region65: #{recurrent_gcn_forward.1} parent=62 // loop_header
                  %s317 = sphi 0, %s321
                  %p318 = scmp.ge.s32.totalorder %s317, 1
                  %s322 = sphi %s285, %s285
                  %s323 = sphi %s283, %s283
                $region66: #{recurrent_gcn_forward.1} parent=62 // loop_header_branch
                  %320 = sbr.rel (%p318) target = $region70
                $region67: #{recurrent_gcn_forward.1} parent=62 // loop_body
                  %v324 = vld [vmem:[%s322] sm:$0xff]
                  %325 = vst [vmem:[%s323] sm:$0xff] %v324
                  %v326 = vld [vmem:[%s322 + $0x10] sm:$0xff]
                  %327 = vst [vmem:[%s323 + $0x8] sm:$0xff] %v326
                  %v328 = vld [vmem:[%s322 + $0x20] sm:$0xff]
                  %329 = vst [vmem:[%s323 + $0x10] sm:$0xff] %v328
                  %v330 = vld [vmem:[%s322 + $0x30] sm:$0xff]
                  %331 = vst [vmem:[%s323 + $0x18] sm:$0xff] %v330
                  %v332 = vld [vmem:[%s322 + $0x40] sm:$0xff]
                  %333 = vst [vmem:[%s323 + $0x20] sm:$0xff] %v332
                  %v334 = vld [vmem:[%s322 + $0x50] sm:$0xff]
                  %335 = vst [vmem:[%s323 + $0x28] sm:$0xff] %v334
                $region68: #{recurrent_gcn_forward.1} parent=62 // loop_footer
                  %s321 = sadd.s32 1, %s317
                $region69: #{recurrent_gcn_forward.1} parent=62 // loop_footer_branch
                  %316 = sbr.rel target = $region65
                $region70: #{recurrent_gcn_forward.1} parent=62 // loop_exit
                  _
              $region63: #{recurrent_gcn_forward.1} parent=47 // pred_fallthru
                _
              // Predicated region
              $region71: #{recurrent_gcn_forward.1} parent=47 // pred_check
                _
              $region72: #{recurrent_gcn_forward.1} parent=47 // pred_check_branch
                %337 = sbr.rel target = $region74
              $region73: #{recurrent_gcn_forward.1} parent=47 // pred_region
                _
              $region74: #{recurrent_gcn_forward.1} parent=47 // pred_fallthru
                _
            $region48: #{recurrent_gcn_forward.1} parent=43 // pred_fallthru
              _
            // Predicated region
            $region49: #{recurrent_gcn_forward.1} parent=43 // pred_check
              _
            $region50: #{recurrent_gcn_forward.1} parent=43 // pred_check_branch
              %291 = sbr.rel target = $region52
            $region51: #{recurrent_gcn_forward.1} parent=43 // pred_region
              %s293 = ssub.s32 256, 1
              loop: start=0, step=1, limit=1
              $region53: #{recurrent_gcn_forward.1} parent=51 // loop_pre_header
                _
              $region54: #{recurrent_gcn_forward.1} parent=51 // loop_header
                %s295 = sphi 0, %s299
                %p296 = scmp.ge.s32.totalorder %s295, 1
                %s300 = sphi %s285, %s285
                %s301 = sphi %s283, %s283
              $region55: #{recurrent_gcn_forward.1} parent=51 // loop_header_branch
                %298 = sbr.rel (%p296) target = $region59
              $region56: #{recurrent_gcn_forward.1} parent=51 // loop_body
                %v302 = vld [vmem:[%s300] sm:%s293]
                %303 = vst [vmem:[%s301] sm:%s293] %v302
                %v304 = vld [vmem:[%s300 + $0x10] sm:%s293]
                %305 = vst [vmem:[%s301 + $0x8] sm:%s293] %v304
                %v306 = vld [vmem:[%s300 + $0x20] sm:%s293]
                %307 = vst [vmem:[%s301 + $0x10] sm:%s293] %v306
                %v308 = vld [vmem:[%s300 + $0x30] sm:%s293]
                %309 = vst [vmem:[%s301 + $0x18] sm:%s293] %v308
                %v310 = vld [vmem:[%s300 + $0x40] sm:%s293]
                %311 = vst [vmem:[%s301 + $0x20] sm:%s293] %v310
                %v312 = vld [vmem:[%s300 + $0x50] sm:%s293]
                %313 = vst [vmem:[%s301 + $0x28] sm:%s293] %v312
              $region57: #{recurrent_gcn_forward.1} parent=51 // loop_footer
                %s299 = sadd.s32 1, %s295
              $region58: #{recurrent_gcn_forward.1} parent=51 // loop_footer_branch
                %294 = sbr.rel target = $region54
              $region59: #{recurrent_gcn_forward.1} parent=51 // loop_exit
                _
            $region52: #{recurrent_gcn_forward.1} parent=43 // pred_fallthru
              _
          $region44: #{recurrent_gcn_forward.1} parent=39 // pred_fallthru
            _
          %338 = vnop
        $region40: #{recurrent_gcn_forward.1} parent=35 // pred_fallthru
          _
        // Predicated region
        $region75: #{recurrent_gcn_forward.1} parent=35 // pred_check
          %p339 = pneg %p62
        $region76: #{recurrent_gcn_forward.1} parent=35 // pred_check_branch
          %341 = sbr.rel (%p339) target = $region78
        $region77: #{recurrent_gcn_forward.1} parent=35 // pred_region
          %s342 = sand.u32 %s52, 1
          %s343 = sand.u32 %s52, 1
          %s344 = smul.addr %s343, 32
          %s345 = scalar_lea.vmem [#allocation3], %s344
          %s346 = smul.addr %s16, 8
          %s347 = scalar_lea.vmem %s1, %s346
          // Predicated region
          $region79: #{recurrent_gcn_forward.1} parent=77 // pred_check
            _
          $region80: #{recurrent_gcn_forward.1} parent=77 // pred_check_branch
            %349 = sbr.rel (0) target = $region82
          $region81: #{recurrent_gcn_forward.1} parent=77 // pred_region
            // Predicated region
            $region83: #{recurrent_gcn_forward.1} parent=81 // pred_check
              _
            $region84: #{recurrent_gcn_forward.1} parent=81 // pred_check_branch
              %351 = sbr.rel (0) target = $region86
            $region85: #{recurrent_gcn_forward.1} parent=81 // pred_region
              // Predicated region
              $region98: #{recurrent_gcn_forward.1} parent=85 // pred_check
                _
              $region99: #{recurrent_gcn_forward.1} parent=85 // pred_check_branch
                %373 = sbr.rel (0) target = $region101
              $region100: #{recurrent_gcn_forward.1} parent=85 // pred_region
                loop: start=0, step=1, limit=1
                $region102: #{recurrent_gcn_forward.1} parent=100 // loop_pre_header
                  _
                $region103: #{recurrent_gcn_forward.1} parent=100 // loop_header
                  %s375 = sphi 0, %s379
                  %p376 = scmp.ge.s32.totalorder %s375, 1
                  %s380 = sphi %s347, %s347
                  %s381 = sphi %s345, %s345
                $region104: #{recurrent_gcn_forward.1} parent=100 // loop_header_branch
                  %378 = sbr.rel (%p376) target = $region108
                $region105: #{recurrent_gcn_forward.1} parent=100 // loop_body
                  %v382 = vld [vmem:[%s380] sm:$0xff]
                  %383 = vst [vmem:[%s381] sm:$0xff] %v382
                  %v384 = vld [vmem:[%s380 + $0x10] sm:$0xff]
                  %385 = vst [vmem:[%s381 + $0x8] sm:$0xff] %v384
                  %v386 = vld [vmem:[%s380 + $0x20] sm:$0xff]
                  %387 = vst [vmem:[%s381 + $0x10] sm:$0xff] %v386
                  %v388 = vld [vmem:[%s380 + $0x30] sm:$0xff]
                  %389 = vst [vmem:[%s381 + $0x18] sm:$0xff] %v388
                $region106: #{recurrent_gcn_forward.1} parent=100 // loop_footer
                  %s379 = sadd.s32 1, %s375
                $region107: #{recurrent_gcn_forward.1} parent=100 // loop_footer_branch
                  %374 = sbr.rel target = $region103
                $region108: #{recurrent_gcn_forward.1} parent=100 // loop_exit
                  _
              $region101: #{recurrent_gcn_forward.1} parent=85 // pred_fallthru
                _
              // Predicated region
              $region109: #{recurrent_gcn_forward.1} parent=85 // pred_check
                _
              $region110: #{recurrent_gcn_forward.1} parent=85 // pred_check_branch
                %391 = sbr.rel target = $region112
              $region111: #{recurrent_gcn_forward.1} parent=85 // pred_region
                _
              $region112: #{recurrent_gcn_forward.1} parent=85 // pred_fallthru
                _
            $region86: #{recurrent_gcn_forward.1} parent=81 // pred_fallthru
              _
            // Predicated region
            $region87: #{recurrent_gcn_forward.1} parent=81 // pred_check
              _
            $region88: #{recurrent_gcn_forward.1} parent=81 // pred_check_branch
              %353 = sbr.rel target = $region90
            $region89: #{recurrent_gcn_forward.1} parent=81 // pred_region
              %s355 = ssub.s32 256, 1
              loop: start=0, step=1, limit=1
              $region91: #{recurrent_gcn_forward.1} parent=89 // loop_pre_header
                _
              $region92: #{recurrent_gcn_forward.1} parent=89 // loop_header
                %s357 = sphi 0, %s361
                %p358 = scmp.ge.s32.totalorder %s357, 1
                %s362 = sphi %s347, %s347
                %s363 = sphi %s345, %s345
              $region93: #{recurrent_gcn_forward.1} parent=89 // loop_header_branch
                %360 = sbr.rel (%p358) target = $region97
              $region94: #{recurrent_gcn_forward.1} parent=89 // loop_body
                %v364 = vld [vmem:[%s362] sm:%s355]
                %365 = vst [vmem:[%s363] sm:%s355] %v364
                %v366 = vld [vmem:[%s362 + $0x10] sm:%s355]
                %367 = vst [vmem:[%s363 + $0x8] sm:%s355] %v366
                %v368 = vld [vmem:[%s362 + $0x20] sm:%s355]
                %369 = vst [vmem:[%s363 + $0x10] sm:%s355] %v368
                %v370 = vld [vmem:[%s362 + $0x30] sm:%s355]
                %371 = vst [vmem:[%s363 + $0x18] sm:%s355] %v370
              $region95: #{recurrent_gcn_forward.1} parent=89 // loop_footer
                %s361 = sadd.s32 1, %s357
              $region96: #{recurrent_gcn_forward.1} parent=89 // loop_footer_branch
                %356 = sbr.rel target = $region92
              $region97: #{recurrent_gcn_forward.1} parent=89 // loop_exit
                _
            $region90: #{recurrent_gcn_forward.1} parent=81 // pred_fallthru
              _
          $region82: #{recurrent_gcn_forward.1} parent=77 // pred_fallthru
            _
          %392 = vnop
        $region78: #{recurrent_gcn_forward.1} parent=35 // pred_fallthru
          _
      $region36: #{recurrent_gcn_forward.1} parent=5 // pred_fallthru
        _
      %p393 = scmp.le.s32.totalorder 1, %s16
      %p394 = scmp.lt.s32.totalorder %s16, 3
      %p395 = pnand %p393, %p394
      %p396 = pneg %p395
      // Predicated region
      $region113: #{recurrent_gcn_forward.1} parent=5 // pred_check
        _
      $region114: #{recurrent_gcn_forward.1} parent=5 // pred_check_branch
        %398 = sbr.rel (%p395) target = $region116
      $region115: #{recurrent_gcn_forward.1} parent=5 // pred_region
        %s399 = ssub.s32 %s16, 1
        %s400 = sand.u32 %s29, 1
        %s401 = sand.u32 %s29, 1
        %s402 = smul.addr %s401, 48
        %s403 = scalar_lea.vmem [#allocation2], %s402
        // Predicated region
        $region117: #{recurrent_gcn_forward.1} parent=115 // pred_check
          %p404 = pneg %p42
        $region118: #{recurrent_gcn_forward.1} parent=115 // pred_check_branch
          %406 = sbr.rel (%p404) target = $region120
        $region119: #{recurrent_gcn_forward.1} parent=115 // pred_region
          _
        $region120: #{recurrent_gcn_forward.1} parent=115 // pred_fallthru
          _
        %s407 = sand.u32 %s55, 1
        %s408 = sand.u32 %s55, 1
        %s409 = smul.addr %s408, 32
        %s410 = scalar_lea.vmem [#allocation3], %s409
        // Predicated region
        $region121: #{recurrent_gcn_forward.1} parent=115 // pred_check
          %p411 = pneg %p68
        $region122: #{recurrent_gcn_forward.1} parent=115 // pred_check_branch
          %413 = sbr.rel (%p411) target = $region124
        $region123: #{recurrent_gcn_forward.1} parent=115 // pred_region
          _
        $region124: #{recurrent_gcn_forward.1} parent=115 // pred_fallthru
          _
        // Predicated region
        $region125: #{recurrent_gcn_forward.1} parent=115 // pred_check
          %p414 = pneg %p89
        $region126: #{recurrent_gcn_forward.1} parent=115 // pred_check_branch
          %416 = sbr.rel (%p414) target = $region128
        $region127: #{recurrent_gcn_forward.1} parent=115 // pred_region
          %418 = dma.done [#allocation5], 2048
        $region128: #{recurrent_gcn_forward.1} parent=115 // pred_fallthru
          _
        // Predicated region
        $region129: #{recurrent_gcn_forward.1} parent=115 // pred_check
          %p419 = pneg %p131
        $region130: #{recurrent_gcn_forward.1} parent=115 // pred_check_branch
          %421 = sbr.rel (%p419) target = $region132
        $region131: #{recurrent_gcn_forward.1} parent=115 // pred_region
          %423 = dma.done [#allocation7], 1536
        $region132: #{recurrent_gcn_forward.1} parent=115 // pred_fallthru
          _
        // Predicated region
        $region133: #{recurrent_gcn_forward.1} parent=115 // pred_check
          %p424 = pneg %p152
        $region134: #{recurrent_gcn_forward.1} parent=115 // pred_check_branch
          %426 = sbr.rel (%p424) target = $region136
        $region135: #{recurrent_gcn_forward.1} parent=115 // pred_region
          %428 = dma.done [#allocation7], 512
        $region136: #{recurrent_gcn_forward.1} parent=115 // pred_fallthru
          _
        // Predicated region
        $region137: #{recurrent_gcn_forward.1} parent=115 // pred_check
          %p429 = pneg %p173
        $region138: #{recurrent_gcn_forward.1} parent=115 // pred_check_branch
          %431 = sbr.rel (%p429) target = $region140
        $region139: #{recurrent_gcn_forward.1} parent=115 // pred_region
          %433 = dma.done [#allocation10], 512
        $region140: #{recurrent_gcn_forward.1} parent=115 // pred_fallthru
          _
        %s434 = sand.u32 %s29, 1
        %s435 = sand.u32 %s29, 1
        %s436 = smul.addr %s435, 48
        %s437 = scalar_lea.vmem [#allocation2], %s436
        %p438 = pneg %p42
        %p439 = pneg %p39
        %s440 = sand.u32 %s55, 1
        %s441 = sand.u32 %s55, 1
        %s442 = smul.addr %s441, 32
        %s443 = scalar_lea.vmem [#allocation3], %s442
        %p444 = pneg %p68
        %p445 = pneg %p65
        %p446 = pneg %p89
        %p447 = pneg %p86
        %p448 = pneg %p110
        %p449 = pneg %p107
        %p450 = pneg %p131
        %p451 = pneg %p128
        %p452 = pneg %p152
        %p453 = pneg %p149
        %p454 = pneg %p173
        %p455 = pneg %p170
        %p456 = pneg %p199
        %p457 = pneg %p196
        %s458 = sand.u32 %s186, 1
        %s459 = sand.u32 %s186, 1
        %s460 = smul.addr %s459, 96
        %s461 = scalar_lea.vmem [#allocation11], %s460
        %v462 = vld [vmem:[#allocation4] sm:$0xff]
        %v463 = vld [vmem:[#allocation4 + $0x8] sm:$0xff]
        %v464 = vld [vmem:[#allocation4 + $0x10] sm:$0xff]
        %v465 = vld [vmem:[#allocation4 + $0x18] sm:$0xff]
        %v466 = vld [vmem:[#allocation4 + $0x20] sm:$0xff]
        %v467 = vld [vmem:[#allocation4 + $0x28] sm:$0xff]
        %v468 = vld [vmem:[#allocation4 + $0x30] sm:$0xff]
        %v469 = vld [vmem:[#allocation4 + $0x38] sm:$0xff]
        %v470 = vld [vmem:[#allocation4 + $0x40] sm:$0xff]
        %v471 = vld [vmem:[#allocation4 + $0x48] sm:$0xff]
        %v472 = vld [vmem:[#allocation4 + $0x50] sm:$0xff]
        %v473 = vld [vmem:[#allocation4 + $0x58] sm:$0xff]
        %v474 = vld [vmem:[#allocation4 + $0x60] sm:$0xff]
        %v475 = vld [vmem:[#allocation4 + $0x68] sm:$0xff]
        %v476 = vld [vmem:[#allocation4 + $0x70] sm:$0xff]
        %v477 = vld [vmem:[#allocation4 + $0x78] sm:$0xff]
        %v478 = vld [vmem:[%s403] sm:$0xff]
        %v479 = vld [vmem:[%s403 + $0x8] sm:$0xff]
        %v480 = vld [vmem:[%s403 + $0x10] sm:$0xff]
        %v481 = vld [vmem:[%s403 + $0x18] sm:$0xff]
        %v482 = vld [vmem:[%s403 + $0x20] sm:$0xff]
        %v483 = vld [vmem:[%s403 + $0x28] sm:$0xff]
        %v484 = vld [vmem:[%s3] sm:$0xff]
        %v485 = vld [vmem:[%s3 + $0x8] sm:$0xff]
        %v486 = vld [vmem:[%s3 + $0x10] sm:$0xff]
        %v487 = vld [vmem:[%s3 + $0x18] sm:$0xff]
        %v488 = vld [vmem:[%s3 + $0x20] sm:$0xff]
        %v489 = vld [vmem:[%s3 + $0x28] sm:$0xff]
        %v490 = vld [vmem:[%s3 + $0x30] sm:$0xff]
        %v491 = vld [vmem:[%s3 + $0x38] sm:$0xff]
        %v492 = vld [vmem:[%s3 + $0x40] sm:$0xff]
        %v493 = vld [vmem:[%s3 + $0x48] sm:$0xff]
        %v494 = vld [vmem:[%s3 + $0x50] sm:$0xff]
        %v495 = vld [vmem:[%s3 + $0x58] sm:$0xff]
        %v496 = vld [vmem:[%s3 + $0x60] sm:$0xff]
        %v497 = vld [vmem:[%s3 + $0x68] sm:$0xff]
        %v498 = vld [vmem:[%s3 + $0x70] sm:$0xff]
        %v499 = vld [vmem:[%s3 + $0x78] sm:$0xff]
        %501 = vset.pattern.permute.xlu0 0
        %502 = vperm.xlu0 %501, %v484
        %v503 = vpop.permute.xlu0 %502
        %506 = vset.pattern.permute.xlu0 0
        %507 = vperm.xlu0 %506, %v485
        %v508 = vpop.permute.xlu0 %507
        %511 = vset.pattern.permute.xlu0 0
        %512 = vperm.xlu0 %511, %v486
        %v513 = vpop.permute.xlu0 %512
        %516 = vset.pattern.permute.xlu0 0
        %517 = vperm.xlu0 %516, %v487
        %v518 = vpop.permute.xlu0 %517
        %521 = vset.pattern.permute.xlu0 0
        %522 = vperm.xlu0 %521, %v488
        %v523 = vpop.permute.xlu0 %522
        %526 = vset.pattern.permute.xlu0 0
        %527 = vperm.xlu0 %526, %v489
        %v528 = vpop.permute.xlu0 %527
        %531 = vset.pattern.permute.xlu0 0
        %532 = vperm.xlu0 %531, %v490
        %v533 = vpop.permute.xlu0 %532
        %536 = vset.pattern.permute.xlu0 0
        %537 = vperm.xlu0 %536, %v491
        %v538 = vpop.permute.xlu0 %537
        %541 = vset.pattern.permute.xlu0 0
        %542 = vperm.xlu0 %541, %v492
        %v543 = vpop.permute.xlu0 %542
        %546 = vset.pattern.permute.xlu0 0
        %547 = vperm.xlu0 %546, %v493
        %v548 = vpop.permute.xlu0 %547
        %551 = vset.pattern.permute.xlu0 0
        %552 = vperm.xlu0 %551, %v494
        %v553 = vpop.permute.xlu0 %552
        %556 = vset.pattern.permute.xlu0 0
        %557 = vperm.xlu0 %556, %v495
        %v558 = vpop.permute.xlu0 %557
        %561 = vset.pattern.permute.xlu0 0
        %562 = vperm.xlu0 %561, %v496
        %v563 = vpop.permute.xlu0 %562
        %566 = vset.pattern.permute.xlu0 0
        %567 = vperm.xlu0 %566, %v497
        %v568 = vpop.permute.xlu0 %567
        %571 = vset.pattern.permute.xlu0 0
        %572 = vperm.xlu0 %571, %v498
        %v573 = vpop.permute.xlu0 %572
        %576 = vset.pattern.permute.xlu0 0
        %577 = vperm.xlu0 %576, %v499
        %v578 = vpop.permute.xlu0 %577
        %vm580 = vcmask 392192
        %v582 = vsel %vm580, %v462, 0
        %v585 = vsel %vm580, %v463, 0
        %v588 = vsel %vm580, %v464, 0
        %v591 = vsel %vm580, %v465, 0
        %v594 = vsel %vm580, %v466, 0
        %v597 = vsel %vm580, %v467, 0
        %v600 = vsel %vm580, %v468, 0
        %v603 = vsel %vm580, %v469, 0
        %v606 = vsel %vm580, %v470, 0
        %v609 = vsel %vm580, %v471, 0
        %v612 = vsel %vm580, %v472, 0
        %v615 = vsel %vm580, %v473, 0
        %v618 = vsel %vm580, %v474, 0
        %v621 = vsel %vm580, %v475, 0
        %v624 = vsel %vm580, %v476, 0
        %v627 = vsel %vm580, %v477, 0
        %629 = vmatpush.msra.mxu0 0.0
        %630 = vmatpush.msra.mxu0 0.0
        %631 = vmatpush.msra.mxu0 0.0
        %632 = vmatpush.msra.mxu0 0.0
        %633 = vmatpush.msra.mxu0 0.0
        %634 = vmatpush.msra.mxu0 0.0
        %635 = vmatpush.msra.mxu0 0.0
        %636 = vmatpush.msra.mxu0 0.0
        %637 = vmatpush.msra.mxu0 0.0
        %638 = vmatpush.msra.mxu0 0.0
        %639 = vmatpush.msra.mxu0 %v483
        %640 = vmatpush.msra.mxu0 %v482
        %641 = vmatpush.msra.mxu0 %v481
        %642 = vmatpush.msra.mxu0 %v480
        %643 = vmatpush.msra.mxu0 %v479
        %644 = vmatpush.msra.mxu0 %v478
        %645 = vmatmul.f32.gmra.mxu0 %v582
        %v646 = vpop.f32.mrf.mxu0
        %v647 = vadd.f32 %v503, %v646
        %648 = vmatmul.f32.gmra.mxu0 %v585
        %v649 = vpop.f32.mrf.mxu0
        %v650 = vadd.f32 %v508, %v649
        %651 = vmatmul.f32.gmra.mxu0 %v588
        %v652 = vpop.f32.mrf.mxu0
        %v653 = vadd.f32 %v513, %v652
        %654 = vmatmul.f32.gmra.mxu0 %v591
        %v655 = vpop.f32.mrf.mxu0
        %v656 = vadd.f32 %v518, %v655
        %657 = vmatmul.f32.gmra.mxu0 %v594
        %v658 = vpop.f32.mrf.mxu0
        %v659 = vadd.f32 %v523, %v658
        %660 = vmatmul.f32.gmra.mxu0 %v597
        %v661 = vpop.f32.mrf.mxu0
        %v662 = vadd.f32 %v528, %v661
        %663 = vmatmul.f32.gmra.mxu0 %v600
        %v664 = vpop.f32.mrf.mxu0
        %v665 = vadd.f32 %v533, %v664
        %666 = vmatmul.f32.gmra.mxu0 %v603
        %v667 = vpop.f32.mrf.mxu0
        %v668 = vadd.f32 %v538, %v667
        %669 = vmatmul.f32.gmra.mxu0 %v606
        %v670 = vpop.f32.mrf.mxu0
        %v671 = vadd.f32 %v543, %v670
        %672 = vmatmul.f32.gmra.mxu0 %v609
        %v673 = vpop.f32.mrf.mxu0
        %v674 = vadd.f32 %v548, %v673
        %675 = vmatmul.f32.gmra.mxu0 %v612
        %v676 = vpop.f32.mrf.mxu0
        %v677 = vadd.f32 %v553, %v676
        %678 = vmatmul.f32.gmra.mxu0 %v615
        %v679 = vpop.f32.mrf.mxu0
        %v680 = vadd.f32 %v558, %v679
        %681 = vmatmul.f32.gmra.mxu0 %v618
        %v682 = vpop.f32.mrf.mxu0
        %v683 = vadd.f32 %v563, %v682
        %684 = vmatmul.f32.gmra.mxu0 %v621
        %v685 = vpop.f32.mrf.mxu0
        %v686 = vadd.f32 %v568, %v685
        %687 = vmatmul.f32.gmra.mxu0 %v624
        %v688 = vpop.f32.mrf.mxu0
        %v689 = vadd.f32 %v573, %v688
        %690 = vmatmul.f32.gmra.mxu0 %v627
        %v691 = vpop.f32.mrf.mxu0
        %v692 = vadd.f32 %v578, %v691
        %693 = vdwg.mxu0
        %v694 = vld [vmem:[%s410] sm:$0xff]
        %v695 = vld [vmem:[%s410 + $0x8] sm:$0xff]
        %v696 = vld [vmem:[%s410 + $0x10] sm:$0xff]
        %v697 = vld [vmem:[%s410 + $0x18] sm:$0xff]
        %v698 = vld [vmem:[#allocation6] sm:$0xff]
        %v699 = vld [vmem:[#allocation6 + $0x8] sm:$0xff]
        %v700 = vld [vmem:[#allocation6 + $0x10] sm:$0xff]
        %v701 = vld [vmem:[#allocation6 + $0x18] sm:$0xff]
        %v702 = vld [vmem:[#allocation6 + $0x20] sm:$0xff]
        %v703 = vld [vmem:[#allocation6 + $0x28] sm:$0xff]
        %v704 = vld [vmem:[#allocation6 + $0x30] sm:$0xff]
        %v705 = vld [vmem:[#allocation6 + $0x38] sm:$0xff]
        %v706 = vld [vmem:[#allocation6 + $0x40] sm:$0xff]
        %v707 = vld [vmem:[#allocation6 + $0x48] sm:$0xff]
        %v708 = vld [vmem:[#allocation6 + $0x50] sm:$0xff]
        %v709 = vld [vmem:[#allocation6 + $0x58] sm:$0xff]
        %711 = vset.pattern.permute.xlu0 0
        %712 = vperm.xlu0 %711, %v698
        %v713 = vpop.permute.xlu0 %712
        %716 = vset.pattern.permute.xlu0 0
        %717 = vperm.xlu0 %716, %v699
        %v718 = vpop.permute.xlu0 %717
        %721 = vset.pattern.permute.xlu0 0
        %722 = vperm.xlu0 %721, %v700
        %v723 = vpop.permute.xlu0 %722
        %726 = vset.pattern.permute.xlu0 0
        %727 = vperm.xlu0 %726, %v701
        %v728 = vpop.permute.xlu0 %727
        %v730 = vmul.f32 %v713, %v694
        %v731 = vmul.f32 %v718, %v695
        %v732 = vmul.f32 %v723, %v696
        %v733 = vmul.f32 %v728, %v697
        %v734 = vadd.f32 %v647, %v730
        %v735 = vadd.f32 %v650, %v731
        %v736 = vadd.f32 %v653, %v732
        %v737 = vadd.f32 %v656, %v733
        %v738 = vxor.u32 %v734, 2147483648
        %v739 = vxor.u32 %v735, 2147483648
        %v740 = vxor.u32 %v736, 2147483648
        %v741 = vxor.u32 %v737, 2147483648
        %v742 = vmul.f32 %v738, 1.442695
        %v743 = vpow.pop %v742
        %v744 = vmul.f32 %v739, 1.442695
        %v745 = vpow.pop %v744
        %v746 = vmul.f32 %v740, 1.442695
        %v747 = vpow.pop %v746
        %v748 = vmul.f32 %v741, 1.442695
        %v749 = vpow.pop %v748
        %v750 = vadd.f32 %v743, 1.0
        %v751 = vadd.f32 %v745, 1.0
        %v752 = vadd.f32 %v747, 1.0
        %v753 = vadd.f32 %v749, 1.0
        %v754 = vrcp.pop %v750
        %v755 = vmul.f32 %v750, %v754
        %v756 = vsub.f32 1.0, %v755
        %v757 = vmul.f32 %v754, %v756
        %v758 = vadd.f32 %v754, %v757
        %vm759 = vweird.f32 %v750
        %vm760 = vweird.f32 %v754
        %vm761 = vmor %vm759, %vm760
        %v762 = vsel %vm761, %v754, %v758
        %v763 = vand.u32 2147483647, %v750
        %vm764 = vcmp.eq.f32.partialorder %v763, 8.507059e+37
        %v765 = vand.u32 %v750, 2147483648
        %v766 = vor.u32 1.1754944e-38, %v765
        %v767 = vsel %vm764, %v766, %v762
        %v768 = vmul.f32 1.0, %v767
        %v769 = vrcp.pop %v751
        %v770 = vmul.f32 %v751, %v769
        %v771 = vsub.f32 1.0, %v770
        %v772 = vmul.f32 %v769, %v771
        %v773 = vadd.f32 %v769, %v772
        %vm774 = vweird.f32 %v751
        %vm775 = vweird.f32 %v769
        %vm776 = vmor %vm774, %vm775
        %v777 = vsel %vm776, %v769, %v773
        %v778 = vand.u32 2147483647, %v751
        %vm779 = vcmp.eq.f32.partialorder %v778, 8.507059e+37
        %v780 = vand.u32 %v751, 2147483648
        %v781 = vor.u32 1.1754944e-38, %v780
        %v782 = vsel %vm779, %v781, %v777
        %v783 = vmul.f32 1.0, %v782
        %v784 = vrcp.pop %v752
        %v785 = vmul.f32 %v752, %v784
        %v786 = vsub.f32 1.0, %v785
        %v787 = vmul.f32 %v784, %v786
        %v788 = vadd.f32 %v784, %v787
        %vm789 = vweird.f32 %v752
        %vm790 = vweird.f32 %v784
        %vm791 = vmor %vm789, %vm790
        %v792 = vsel %vm791, %v784, %v788
        %v793 = vand.u32 2147483647, %v752
        %vm794 = vcmp.eq.f32.partialorder %v793, 8.507059e+37
        %v795 = vand.u32 %v752, 2147483648
        %v796 = vor.u32 1.1754944e-38, %v795
        %v797 = vsel %vm794, %v796, %v792
        %v798 = vmul.f32 1.0, %v797
        %v799 = vrcp.pop %v753
        %v800 = vmul.f32 %v753, %v799
        %v801 = vsub.f32 1.0, %v800
        %v802 = vmul.f32 %v799, %v801
        %v803 = vadd.f32 %v799, %v802
        %vm804 = vweird.f32 %v753
        %vm805 = vweird.f32 %v799
        %vm806 = vmor %vm804, %vm805
        %v807 = vsel %vm806, %v799, %v803
        %v808 = vand.u32 2147483647, %v753
        %vm809 = vcmp.eq.f32.partialorder %v808, 8.507059e+37
        %v810 = vand.u32 %v753, 2147483648
        %v811 = vor.u32 1.1754944e-38, %v810
        %v812 = vsel %vm809, %v811, %v807
        %v813 = vmul.f32 1.0, %v812
        %815 = vset.pattern.permute.xlu0 0
        %816 = vperm.xlu0 %815, %v702
        %v817 = vpop.permute.xlu0 %816
        %820 = vset.pattern.permute.xlu0 0
        %821 = vperm.xlu0 %820, %v703
        %v822 = vpop.permute.xlu0 %821
        %825 = vset.pattern.permute.xlu0 0
        %826 = vperm.xlu0 %825, %v704
        %v827 = vpop.permute.xlu0 %826
        %830 = vset.pattern.permute.xlu0 0
        %831 = vperm.xlu0 %830, %v705
        %v832 = vpop.permute.xlu0 %831
        %v834 = vmul.f32 %v817, %v694
        %v835 = vmul.f32 %v822, %v695
        %v836 = vmul.f32 %v827, %v696
        %v837 = vmul.f32 %v832, %v697
        %v838 = vadd.f32 %v659, %v834
        %v839 = vadd.f32 %v662, %v835
        %v840 = vadd.f32 %v665, %v836
        %v841 = vadd.f32 %v668, %v837
        %v842 = vxor.u32 %v838, 2147483648
        %v843 = vxor.u32 %v839, 2147483648
        %v844 = vxor.u32 %v840, 2147483648
        %v845 = vxor.u32 %v841, 2147483648
        %v846 = vmul.f32 %v842, 1.442695
        %v847 = vpow.pop %v846
        %v848 = vmul.f32 %v843, 1.442695
        %v849 = vpow.pop %v848
        %v850 = vmul.f32 %v844, 1.442695
        %v851 = vpow.pop %v850
        %v852 = vmul.f32 %v845, 1.442695
        %v853 = vpow.pop %v852
        %v854 = vadd.f32 %v847, 1.0
        %v855 = vadd.f32 %v849, 1.0
        %v856 = vadd.f32 %v851, 1.0
        %v857 = vadd.f32 %v853, 1.0
        %v858 = vrcp.pop %v854
        %v859 = vmul.f32 %v854, %v858
        %v860 = vsub.f32 1.0, %v859
        %v861 = vmul.f32 %v858, %v860
        %v862 = vadd.f32 %v858, %v861
        %vm863 = vweird.f32 %v854
        %vm864 = vweird.f32 %v858
        %vm865 = vmor %vm863, %vm864
        %v866 = vsel %vm865, %v858, %v862
        %v867 = vand.u32 2147483647, %v854
        %vm868 = vcmp.eq.f32.partialorder %v867, 8.507059e+37
        %v869 = vand.u32 %v854, 2147483648
        %v870 = vor.u32 1.1754944e-38, %v869
        %v871 = vsel %vm868, %v870, %v866
        %v872 = vmul.f32 1.0, %v871
        %v873 = vrcp.pop %v855
        %v874 = vmul.f32 %v855, %v873
        %v875 = vsub.f32 1.0, %v874
        %v876 = vmul.f32 %v873, %v875
        %v877 = vadd.f32 %v873, %v876
        %vm878 = vweird.f32 %v855
        %vm879 = vweird.f32 %v873
        %vm880 = vmor %vm878, %vm879
        %v881 = vsel %vm880, %v873, %v877
        %v882 = vand.u32 2147483647, %v855
        %vm883 = vcmp.eq.f32.partialorder %v882, 8.507059e+37
        %v884 = vand.u32 %v855, 2147483648
        %v885 = vor.u32 1.1754944e-38, %v884
        %v886 = vsel %vm883, %v885, %v881
        %v887 = vmul.f32 1.0, %v886
        %v888 = vrcp.pop %v856
        %v889 = vmul.f32 %v856, %v888
        %v890 = vsub.f32 1.0, %v889
        %v891 = vmul.f32 %v888, %v890
        %v892 = vadd.f32 %v888, %v891
        %vm893 = vweird.f32 %v856
        %vm894 = vweird.f32 %v888
        %vm895 = vmor %vm893, %vm894
        %v896 = vsel %vm895, %v888, %v892
        %v897 = vand.u32 2147483647, %v856
        %vm898 = vcmp.eq.f32.partialorder %v897, 8.507059e+37
        %v899 = vand.u32 %v856, 2147483648
        %v900 = vor.u32 1.1754944e-38, %v899
        %v901 = vsel %vm898, %v900, %v896
        %v902 = vmul.f32 1.0, %v901
        %v903 = vrcp.pop %v857
        %v904 = vmul.f32 %v857, %v903
        %v905 = vsub.f32 1.0, %v904
        %v906 = vmul.f32 %v903, %v905
        %v907 = vadd.f32 %v903, %v906
        %vm908 = vweird.f32 %v857
        %vm909 = vweird.f32 %v903
        %vm910 = vmor %vm908, %vm909
        %v911 = vsel %vm910, %v903, %v907
        %v912 = vand.u32 2147483647, %v857
        %vm913 = vcmp.eq.f32.partialorder %v912, 8.507059e+37
        %v914 = vand.u32 %v857, 2147483648
        %v915 = vor.u32 1.1754944e-38, %v914
        %v916 = vsel %vm913, %v915, %v911
        %v917 = vmul.f32 1.0, %v916
        %v918 = vtanh.pop %v671
        %v919 = vtanh.pop %v674
        %v920 = vtanh.pop %v677
        %v921 = vtanh.pop %v680
        %v922 = vmul.f32 %v872, %v694
        %v923 = vmul.f32 %v887, %v695
        %v924 = vmul.f32 %v902, %v696
        %v925 = vmul.f32 %v917, %v697
        %v926 = vmul.f32 %v768, %v918
        %v927 = vmul.f32 %v783, %v919
        %v928 = vmul.f32 %v798, %v920
        %v929 = vmul.f32 %v813, %v921
        %v930 = vadd.f32 %v922, %v926
        %v931 = vadd.f32 %v923, %v927
        %v932 = vadd.f32 %v924, %v928
        %v933 = vadd.f32 %v925, %v929
        %935 = vset.pattern.permute.xlu0 0
        %936 = vperm.xlu0 %935, %v706
        %v937 = vpop.permute.xlu0 %936
        %940 = vset.pattern.permute.xlu0 0
        %941 = vperm.xlu0 %940, %v707
        %v942 = vpop.permute.xlu0 %941
        %945 = vset.pattern.permute.xlu0 0
        %946 = vperm.xlu0 %945, %v708
        %v947 = vpop.permute.xlu0 %946
        %950 = vset.pattern.permute.xlu0 0
        %951 = vperm.xlu0 %950, %v709
        %v952 = vpop.permute.xlu0 %951
        %v954 = vmul.f32 %v937, %v930
        %v955 = vmul.f32 %v942, %v931
        %v956 = vmul.f32 %v947, %v932
        %v957 = vmul.f32 %v952, %v933
        %v958 = vadd.f32 %v683, %v954
        %v959 = vadd.f32 %v686, %v955
        %v960 = vadd.f32 %v689, %v956
        %v961 = vadd.f32 %v692, %v957
        %v962 = vxor.u32 %v958, 2147483648
        %v963 = vxor.u32 %v959, 2147483648
        %v964 = vxor.u32 %v960, 2147483648
        %v965 = vxor.u32 %v961, 2147483648
        %v966 = vmul.f32 %v962, 1.442695
        %v967 = vpow.pop %v966
        %v968 = vmul.f32 %v963, 1.442695
        %v969 = vpow.pop %v968
        %v970 = vmul.f32 %v964, 1.442695
        %v971 = vpow.pop %v970
        %v972 = vmul.f32 %v965, 1.442695
        %v973 = vpow.pop %v972
        %v974 = vadd.f32 %v967, 1.0
        %v975 = vadd.f32 %v969, 1.0
        %v976 = vadd.f32 %v971, 1.0
        %v977 = vadd.f32 %v973, 1.0
        %v978 = vrcp.pop %v974
        %v979 = vmul.f32 %v974, %v978
        %v980 = vsub.f32 1.0, %v979
        %v981 = vmul.f32 %v978, %v980
        %v982 = vadd.f32 %v978, %v981
        %vm983 = vweird.f32 %v974
        %vm984 = vweird.f32 %v978
        %vm985 = vmor %vm983, %vm984
        %v986 = vsel %vm985, %v978, %v982
        %v987 = vand.u32 2147483647, %v974
        %vm988 = vcmp.eq.f32.partialorder %v987, 8.507059e+37
        %v989 = vand.u32 %v974, 2147483648
        %v990 = vor.u32 1.1754944e-38, %v989
        %v991 = vsel %vm988, %v990, %v986
        %v992 = vmul.f32 1.0, %v991
        %v993 = vrcp.pop %v975
        %v994 = vmul.f32 %v975, %v993
        %v995 = vsub.f32 1.0, %v994
        %v996 = vmul.f32 %v993, %v995
        %v997 = vadd.f32 %v993, %v996
        %vm998 = vweird.f32 %v975
        %vm999 = vweird.f32 %v993
        %vm1000 = vmor %vm998, %vm999
        %v1001 = vsel %vm1000, %v993, %v997
        %v1002 = vand.u32 2147483647, %v975
        %vm1003 = vcmp.eq.f32.partialorder %v1002, 8.507059e+37
        %v1004 = vand.u32 %v975, 2147483648
        %v1005 = vor.u32 1.1754944e-38, %v1004
        %v1006 = vsel %vm1003, %v1005, %v1001
        %v1007 = vmul.f32 1.0, %v1006
        %v1008 = vrcp.pop %v976
        %v1009 = vmul.f32 %v976, %v1008
        %v1010 = vsub.f32 1.0, %v1009
        %v1011 = vmul.f32 %v1008, %v1010
        %v1012 = vadd.f32 %v1008, %v1011
        %vm1013 = vweird.f32 %v976
        %vm1014 = vweird.f32 %v1008
        %vm1015 = vmor %vm1013, %vm1014
        %v1016 = vsel %vm1015, %v1008, %v1012
        %v1017 = vand.u32 2147483647, %v976
        %vm1018 = vcmp.eq.f32.partialorder %v1017, 8.507059e+37
        %v1019 = vand.u32 %v976, 2147483648
        %v1020 = vor.u32 1.1754944e-38, %v1019
        %v1021 = vsel %vm1018, %v1020, %v1016
        %v1022 = vmul.f32 1.0, %v1021
        %v1023 = vrcp.pop %v977
        %v1024 = vmul.f32 %v977, %v1023
        %v1025 = vsub.f32 1.0, %v1024
        %v1026 = vmul.f32 %v1023, %v1025
        %v1027 = vadd.f32 %v1023, %v1026
        %vm1028 = vweird.f32 %v977
        %vm1029 = vweird.f32 %v1023
        %vm1030 = vmor %vm1028, %vm1029
        %v1031 = vsel %vm1030, %v1023, %v1027
        %v1032 = vand.u32 2147483647, %v977
        %vm1033 = vcmp.eq.f32.partialorder %v1032, 8.507059e+37
        %v1034 = vand.u32 %v977, 2147483648
        %v1035 = vor.u32 1.1754944e-38, %v1034
        %v1036 = vsel %vm1033, %v1035, %v1031
        %v1037 = vmul.f32 1.0, %v1036
        %v1038 = vtanh.pop %v930
        %v1039 = vtanh.pop %v931
        %v1040 = vtanh.pop %v932
        %v1041 = vtanh.pop %v933
        %v1042 = vmul.f32 %v992, %v1038
        %v1043 = vmul.f32 %v1007, %v1039
        %v1044 = vmul.f32 %v1022, %v1040
        %v1045 = vmul.f32 %v1037, %v1041
        %v1046 = vld [vmem:[#allocation8] sm:$0xff]
        %v1047 = vld [vmem:[#allocation8 + $0x8] sm:$0xff]
        %v1048 = vld [vmem:[#allocation8 + $0x10] sm:$0xff]
        %v1049 = vld [vmem:[#allocation8 + $0x18] sm:$0xff]
        %v1050 = vmax.f32 %v1042, 0.0
        %v1051 = vmax.f32 %v1043, 0.0
        %v1052 = vmax.f32 %v1044, 0.0
        %v1053 = vmax.f32 %v1045, 0.0
        %v1054 = vld [vmem:[#allocation9] sm:$0xff]
        %v1055 = vld [vmem:[#allocation9 + $0x8] sm:$0xff]
        %v1056 = vld [vmem:[#allocation9 + $0x10] sm:$0xff]
        %v1057 = vld [vmem:[#allocation9 + $0x18] sm:$0xff]
        %1059 = vset.pattern.permute.xlu0 0
        %1060 = vperm.xlu0 %1059, %v1054
        %v1061 = vpop.permute.xlu0 %1060
        %1064 = vset.pattern.permute.xlu0 0
        %1065 = vperm.xlu0 %1064, %v1055
        %v1066 = vpop.permute.xlu0 %1065
        %1069 = vset.pattern.permute.xlu0 0
        %1070 = vperm.xlu0 %1069, %v1056
        %v1071 = vpop.permute.xlu0 %1070
        %1074 = vset.pattern.permute.xlu0 0
        %1075 = vperm.xlu0 %1074, %v1057
        %v1076 = vpop.permute.xlu0 %1075
        %vm1078 = vcmask 261120
        %v1080 = vsel %vm1078, %v1046, 0
        %v1083 = vsel %vm1078, %v1047, 0
        %v1086 = vsel %vm1078, %v1048, 0
        %v1089 = vsel %vm1078, %v1049, 0
        %1091 = vmatpush.msra.mxu0 0.0
        %1092 = vmatpush.msra.mxu0 0.0
        %1093 = vmatpush.msra.mxu0 0.0
        %1094 = vmatpush.msra.mxu0 0.0
        %1095 = vmatpush.msra.mxu0 0.0
        %1096 = vmatpush.msra.mxu0 0.0
        %1097 = vmatpush.msra.mxu0 0.0
        %1098 = vmatpush.msra.mxu0 0.0
        %1099 = vmatpush.msra.mxu0 0.0
        %1100 = vmatpush.msra.mxu0 0.0
        %1101 = vmatpush.msra.mxu0 0.0
        %1102 = vmatpush.msra.mxu0 0.0
        %1103 = vmatpush.msra.mxu0 %v1053
        %1104 = vmatpush.msra.mxu0 %v1052
        %1105 = vmatpush.msra.mxu0 %v1051
        %1106 = vmatpush.msra.mxu0 %v1050
        %1107 = vmatmul.f32.gmra.mxu0 %v1080
        %v1108 = vpop.f32.mrf.mxu0
        %v1109 = vadd.f32 %v1061, %v1108
        %1110 = vmatmul.f32.gmra.mxu0 %v1083
        %v1111 = vpop.f32.mrf.mxu0
        %v1112 = vadd.f32 %v1066, %v1111
        %1113 = vmatmul.f32.gmra.mxu0 %v1086
        %v1114 = vpop.f32.mrf.mxu0
        %v1115 = vadd.f32 %v1071, %v1114
        %1116 = vmatmul.f32.gmra.mxu0 %v1089
        %v1117 = vpop.f32.mrf.mxu0
        %v1118 = vadd.f32 %v1076, %v1117
        %1119 = vdwg.mxu0
        %1120 = vst [vmem:[%s461] sm:$0xff] %v1109
        %1121 = vst [vmem:[%s461 + $0x8] sm:$0xff] %v1112
        %1122 = vst [vmem:[%s461 + $0x10] sm:$0xff] %v1115
        %1123 = vst [vmem:[%s461 + $0x18] sm:$0xff] %v1118
        %1124 = vst [vmem:[%s461 + $0x20] sm:$0xff] %v1042
        %1125 = vst [vmem:[%s461 + $0x28] sm:$0xff] %v1043
        %1126 = vst [vmem:[%s461 + $0x30] sm:$0xff] %v1044
        %1127 = vst [vmem:[%s461 + $0x38] sm:$0xff] %v1045
        %1128 = vst [vmem:[%s461 + $0x40] sm:$0xff] %v930
        %1129 = vst [vmem:[%s461 + $0x48] sm:$0xff] %v931
        %1130 = vst [vmem:[%s461 + $0x50] sm:$0xff] %v932
        %1131 = vst [vmem:[%s461 + $0x58] sm:$0xff] %v933
        %s1132 = sand.u32 %s186, 1
        %s1133 = sand.u32 %s186, 1
        %s1134 = smul.addr %s1133, 96
        %s1135 = scalar_lea.vmem [#allocation11], %s1134
        // Predicated region
        $region141: #{recurrent_gcn_forward.1} parent=115 // pred_check
          %p1136 = pneg %p196
        $region142: #{recurrent_gcn_forward.1} parent=115 // pred_check_branch
          %1138 = sbr.rel (%p1136) target = $region144
        $region143: #{recurrent_gcn_forward.1} parent=115 // pred_region
          %s1139 = smul.addr %s21, 8
          %s1140 = scalar_lea.vmem %s7, %s1139
          // Predicated region
          $region145: #{recurrent_gcn_forward.1} parent=143 // pred_check
            _
          $region146: #{recurrent_gcn_forward.1} parent=143 // pred_check_branch
            %1142 = sbr.rel (0) target = $region148
          $region147: #{recurrent_gcn_forward.1} parent=143 // pred_region
            // Predicated region
            $region149: #{recurrent_gcn_forward.1} parent=147 // pred_check
              _
            $region150: #{recurrent_gcn_forward.1} parent=147 // pred_check_branch
              %1144 = sbr.rel (0) target = $region152
            $region151: #{recurrent_gcn_forward.1} parent=147 // pred_region
              // Predicated region
              $region164: #{recurrent_gcn_forward.1} parent=151 // pred_check
                _
              $region165: #{recurrent_gcn_forward.1} parent=151 // pred_check_branch
                %1182 = sbr.rel (0) target = $region167
              $region166: #{recurrent_gcn_forward.1} parent=151 // pred_region
                loop: start=0, step=1, limit=1
                $region168: #{recurrent_gcn_forward.1} parent=166 // loop_pre_header
                  _
                $region169: #{recurrent_gcn_forward.1} parent=166 // loop_header
                  %s1184 = sphi 0, %s1188
                  %p1185 = scmp.ge.s32.totalorder %s1184, 1
                  %s1189 = sphi %s1135, %s1135
                  %s1190 = sphi %s1140, %s1140
                $region170: #{recurrent_gcn_forward.1} parent=166 // loop_header_branch
                  %1187 = sbr.rel (%p1185) target = $region174
                $region171: #{recurrent_gcn_forward.1} parent=166 // loop_body
                  %v1191 = vld [vmem:[%s1189] sm:$0xff]
                  %1192 = vst [vmem:[%s1190] sm:$0xff] %v1191
                  %v1193 = vld [vmem:[%s1189 + $0x8] sm:$0xff]
                  %1194 = vst [vmem:[%s1190 + $0x10] sm:$0xff] %v1193
                  %v1195 = vld [vmem:[%s1189 + $0x10] sm:$0xff]
                  %1196 = vst [vmem:[%s1190 + $0x20] sm:$0xff] %v1195
                  %v1197 = vld [vmem:[%s1189 + $0x18] sm:$0xff]
                  %1198 = vst [vmem:[%s1190 + $0x30] sm:$0xff] %v1197
                  %v1199 = vld [vmem:[%s1189 + $0x20] sm:$0xff]
                  %1200 = vst [vmem:[%s1190 + $0x40] sm:$0xff] %v1199
                  %v1201 = vld [vmem:[%s1189 + $0x28] sm:$0xff]
                  %1202 = vst [vmem:[%s1190 + $0x50] sm:$0xff] %v1201
                  %v1203 = vld [vmem:[%s1189 + $0x30] sm:$0xff]
                  %1204 = vst [vmem:[%s1190 + $0x60] sm:$0xff] %v1203
                  %v1205 = vld [vmem:[%s1189 + $0x38] sm:$0xff]
                  %1206 = vst [vmem:[%s1190 + $0x70] sm:$0xff] %v1205
                  %v1207 = vld [vmem:[%s1189 + $0x40] sm:$0xff]
                  %1208 = vst [vmem:[%s1190 + $0x80] sm:$0xff] %v1207
                  %v1209 = vld [vmem:[%s1189 + $0x48] sm:$0xff]
                  %1210 = vst [vmem:[%s1190 + $0x90] sm:$0xff] %v1209
                  %v1211 = vld [vmem:[%s1189 + $0x50] sm:$0xff]
                  %1212 = vst [vmem:[%s1190 + $0xa0] sm:$0xff] %v1211
                  %v1213 = vld [vmem:[%s1189 + $0x58] sm:$0xff]
                  %1214 = vst [vmem:[%s1190 + $0xb0] sm:$0xff] %v1213
                $region172: #{recurrent_gcn_forward.1} parent=166 // loop_footer
                  %s1188 = sadd.s32 1, %s1184
                $region173: #{recurrent_gcn_forward.1} parent=166 // loop_footer_branch
                  %1183 = sbr.rel target = $region169
                $region174: #{recurrent_gcn_forward.1} parent=166 // loop_exit
                  _
              $region167: #{recurrent_gcn_forward.1} parent=151 // pred_fallthru
                _
              // Predicated region
              $region175: #{recurrent_gcn_forward.1} parent=151 // pred_check
                _
              $region176: #{recurrent_gcn_forward.1} parent=151 // pred_check_branch
                %1216 = sbr.rel target = $region178
              $region177: #{recurrent_gcn_forward.1} parent=151 // pred_region
                _
              $region178: #{recurrent_gcn_forward.1} parent=151 // pred_fallthru
                _
            $region152: #{recurrent_gcn_forward.1} parent=147 // pred_fallthru
              _
            // Predicated region
            $region153: #{recurrent_gcn_forward.1} parent=147 // pred_check
              _
            $region154: #{recurrent_gcn_forward.1} parent=147 // pred_check_branch
              %1146 = sbr.rel target = $region156
            $region155: #{recurrent_gcn_forward.1} parent=147 // pred_region
              %s1148 = ssub.s32 256, 1
              loop: start=0, step=1, limit=1
              $region157: #{recurrent_gcn_forward.1} parent=155 // loop_pre_header
                _
              $region158: #{recurrent_gcn_forward.1} parent=155 // loop_header
                %s1150 = sphi 0, %s1154
                %p1151 = scmp.ge.s32.totalorder %s1150, 1
                %s1155 = sphi %s1135, %s1135
                %s1156 = sphi %s1140, %s1140
              $region159: #{recurrent_gcn_forward.1} parent=155 // loop_header_branch
                %1153 = sbr.rel (%p1151) target = $region163
              $region160: #{recurrent_gcn_forward.1} parent=155 // loop_body
                %v1157 = vld [vmem:[%s1155] sm:%s1148]
                %1158 = vst [vmem:[%s1156] sm:%s1148] %v1157
                %v1159 = vld [vmem:[%s1155 + $0x8] sm:%s1148]
                %1160 = vst [vmem:[%s1156 + $0x10] sm:%s1148] %v1159
                %v1161 = vld [vmem:[%s1155 + $0x10] sm:%s1148]
                %1162 = vst [vmem:[%s1156 + $0x20] sm:%s1148] %v1161
                %v1163 = vld [vmem:[%s1155 + $0x18] sm:%s1148]
                %1164 = vst [vmem:[%s1156 + $0x30] sm:%s1148] %v1163
                %v1165 = vld [vmem:[%s1155 + $0x20] sm:%s1148]
                %1166 = vst [vmem:[%s1156 + $0x40] sm:%s1148] %v1165
                %v1167 = vld [vmem:[%s1155 + $0x28] sm:%s1148]
                %1168 = vst [vmem:[%s1156 + $0x50] sm:%s1148] %v1167
                %v1169 = vld [vmem:[%s1155 + $0x30] sm:%s1148]
                %1170 = vst [vmem:[%s1156 + $0x60] sm:%s1148] %v1169
                %v1171 = vld [vmem:[%s1155 + $0x38] sm:%s1148]
                %1172 = vst [vmem:[%s1156 + $0x70] sm:%s1148] %v1171
                %v1173 = vld [vmem:[%s1155 + $0x40] sm:%s1148]
                %1174 = vst [vmem:[%s1156 + $0x80] sm:%s1148] %v1173
                %v1175 = vld [vmem:[%s1155 + $0x48] sm:%s1148]
                %1176 = vst [vmem:[%s1156 + $0x90] sm:%s1148] %v1175
                %v1177 = vld [vmem:[%s1155 + $0x50] sm:%s1148]
                %1178 = vst [vmem:[%s1156 + $0xa0] sm:%s1148] %v1177
                %v1179 = vld [vmem:[%s1155 + $0x58] sm:%s1148]
                %1180 = vst [vmem:[%s1156 + $0xb0] sm:%s1148] %v1179
              $region161: #{recurrent_gcn_forward.1} parent=155 // loop_footer
                %s1154 = sadd.s32 1, %s1150
              $region162: #{recurrent_gcn_forward.1} parent=155 // loop_footer_branch
                %1149 = sbr.rel target = $region158
              $region163: #{recurrent_gcn_forward.1} parent=155 // loop_exit
                _
            $region156: #{recurrent_gcn_forward.1} parent=147 // pred_fallthru
              _
          $region148: #{recurrent_gcn_forward.1} parent=143 // pred_fallthru
            _
          %1217 = vnop
        $region144: #{recurrent_gcn_forward.1} parent=115 // pred_fallthru
          _
      $region116: #{recurrent_gcn_forward.1} parent=5 // pred_fallthru
        _
      %p1218 = scmp.le.s32.totalorder 2, %s16
      // Predicated region
      $region179: #{recurrent_gcn_forward.1} parent=5 // pred_check
        %p1219 = pneg %p1218
      $region180: #{recurrent_gcn_forward.1} parent=5 // pred_check_branch
        %1221 = sbr.rel (%p1219) target = $region182
      $region181: #{recurrent_gcn_forward.1} parent=5 // pred_region
        %s1222 = ssub.s32 %s16, 2
        // Predicated region
        $region183: #{recurrent_gcn_forward.1} parent=181 // pred_check
          %p1223 = pneg %p202
        $region184: #{recurrent_gcn_forward.1} parent=181 // pred_check_branch
          %1225 = sbr.rel (%p1223) target = $region186
        $region185: #{recurrent_gcn_forward.1} parent=181 // pred_region
          %s1226 = sand.u32 %s187, 1
          %s1227 = sand.u32 %s187, 1
          %s1228 = smul.addr %s1227, 96
          %s1229 = scalar_lea.vmem [#allocation11], %s1228
        $region186: #{recurrent_gcn_forward.1} parent=181 // pred_fallthru
          _
      $region182: #{recurrent_gcn_forward.1} parent=5 // pred_fallthru
        _
    $region6: #{recurrent_gcn_forward.1} parent=1 // loop_footer
      %s20 = sadd.s32 1, %s16
    $region7: #{recurrent_gcn_forward.1} parent=1 // loop_footer_branch
      %15 = sbr.rel target = $region3
    $region8: #{recurrent_gcn_forward.1} parent=1 // loop_exit
      _
    %1230 = vsyncpa [#allocation5], 1
    %s1231 = scalar_lea.sflag [#allocation5], 1
    %1232 = vsyncpa %s1231, 1
    %1233 = vsyncpa [#allocation7], 1
    %1234 = vsyncpa [#allocation10], 1

</llo_original>
